<compile_context>
chip_gen: v6e
topology: v6e:2x2x1
jax: 0.10.0
libtpu: 0.0.40
codegen_flags: <defaults>
</compile_context>

<pallas_src>
import functools
import math

import jax
import jax.numpy as jnp
from jax.experimental import pallas as pl
from jax.experimental.pallas import tpu as pltpu

BN_EPS = 1e-5
HALF_LOG_2PI = 0.5 * math.log(2.0 * math.pi)
LANES = 128
HALF = 64  # actor block = lanes [0:64), critic block = lanes [64:128)


# ----------------------------------------------------------------------------
# Fused Pallas kernel
# ----------------------------------------------------------------------------
def ppo_ac_fused_kernel(s_ref, eps_ref, w_ref, p_ref, out_ref,
                        *, action_size: int, std_scale: float):
    """s_ref/eps_ref: (B,128). w_ref: (4,128,128). p_ref: (16,128).
    p_ref rows: 0..3 BN gamma (layer 1..4), 4..7 BN beta, 8..11 linear bias,
                12 per-lane PReLU alpha, 13 std row.  out_ref: (B,128)."""
    A = action_size
    x = s_ref[...]                                   # (B,128)
    eps = eps_ref[...]                               # (B,128)
    alpha = p_ref[12:13, :]                          # (1,128) per-lane PReLU alpha
    lane = jax.lax.broadcasted_iota(jnp.int32, (1, LANES), 1)

    def bn_linear(h, l):
        g = p_ref[l:l + 1, :]
        be = p_ref[4 + l:5 + l, :]
        bi = p_ref[8 + l:9 + l, :]
        m = jnp.mean(h, axis=0, keepdims=True)
        var = jnp.mean((h - m) ** 2, axis=0, keepdims=True)
        hn = (h - m) * jax.lax.rsqrt(var + BN_EPS) * g + be
        return jnp.dot(hn, w_ref[l], preferred_element_type=jnp.float32) + bi

    # Hidden layers 1..3: BN -> Linear -> PReLU (per-lane alpha row).
    h = x
    for l in range(3):
        z = bn_linear(h, l)
        h = jnp.where(z >= 0.0, z, alpha * z)

    # Layer 4: actor lanes get tanh (action mean), critic lanes get PReLU (value).
    z4 = bn_linear(h, 3)
    y4 = jnp.where(lane < HALF, jnp.tanh(z4), jnp.where(z4 >= 0.0, z4, alpha * z4))

    # ---------------- Normal distribution head (actor lanes only) --------------
    actor_mask = lane < A
    std = jnp.clip(p_ref[13:14, :], 0.05, 0.5 * std_scale)   # hardtanh(std, .05, .5*scale)
    log_std = jnp.log(std)

    mean_a = jnp.where(actor_mask, y4, 0.0)                   # action mean
    act = jnp.where(actor_mask, y4 + std * eps, 0.0)          # resampled_action
    diff = act - mean_a
    logp_per = -(diff * diff) / (2.0 * std * std) - log_std - HALF_LOG_2PI
    logp = jnp.sum(jnp.where(actor_mask, logp_per, 0.0), axis=-1, keepdims=True)   # (B,1)

    ent_per = 0.5 + HALF_LOG_2PI + log_std                                          # (1,128)
    ent = jnp.sum(jnp.where(actor_mask, ent_per, 0.0), axis=-1, keepdims=True) / A  # (1,1)

    v = y4[:, HALF:HALF + 1]                                                         # (B,1)

    # Pack everything into one lane-dense slab: act in [0:A), logp@A, ent@A+1, v@A+2.
    slab = jnp.where(lane == A, logp, act)
    slab = jnp.where(lane == A + 1, ent, slab)
    slab = jnp.where(lane == A + 2, v, slab)
    out_ref[...] = slab


# ----------------------------------------------------------------------------
# Wrapper
# ----------------------------------------------------------------------------
def ppo_actor_critic_forward(s, eps, wslab, pslab, *, action_size, std_scale=1.0):
    B, S = s.shape
    A = action_size
    # Lane-dense packed inputs (s duplicated into actor/critic blocks).
    s_pack = jnp.zeros((B, LANES), jnp.float32)
    s_pack = s_pack.at[:, :S].set(s).at[:, HALF:HALF + S].set(s)
    eps_pack = jnp.zeros((B, LANES), jnp.float32).at[:, :A].set(eps)

    vmem = pl.BlockSpec(memory_space=pltpu.MemorySpace.VMEM)
    out = pl.pallas_call(
        functools.partial(ppo_ac_fused_kernel,
                          action_size=A, std_scale=float(std_scale)),
        out_shape=jax.ShapeDtypeStruct((B, LANES), jnp.float32),
        in_specs=[vmem, vmem, vmem, vmem],
        out_specs=vmem,
    )(s_pack, eps_pack, wslab, pslab)

    act = out[:, :A]                 # resampled_action (B, A)
    logp = out[:, A]                 # log_prob.sum(-1)  (B,)
    ent = out[:, A + 1]              # entropy.mean(1)   (B,)
    v = out[:, A + 2:A + 3]          # critic value      (B, 1)
    return act, logp, ent, v


# ----------------------------------------------------------------------------
# Parameter construction (mirrors the PyTorch init) and packing into slabs
# ----------------------------------------------------------------------------
def _linear_params(key, in_dim, out_dim, w_lim):
    kw, kb = jax.random.split(key)
    w = jax.random.uniform(kw, (in_dim, out_dim), jnp.float32, -w_lim, w_lim)
    b_lim = 1.0 / math.sqrt(in_dim)   # PyTorch default bias init (not reset)
    b = jax.random.uniform(kb, (1, out_dim), jnp.float32, -b_lim, b_lim)
    return w, b


def _bn_params(dim):
    return jnp.ones((1, dim), jnp.float32), jnp.zeros((1, dim), jnp.float32)


def make_params(key, state_size, action_size, hidden):
    h0, h1, h2 = hidden
    keys = jax.random.split(key, 8)

    def head(ks, last_out):
        g1, b1 = _bn_params(state_size)
        w1, bi1 = _linear_params(ks[0], state_size, h0, 1.0 / math.sqrt(h0))
        g2, b2 = _bn_params(h0)
        w2, bi2 = _linear_params(ks[1], h0, h1, 1.0 / math.sqrt(h1))
        g3, b3 = _bn_params(h1)
        w3, bi3 = _linear_params(ks[2], h1, h2, 1.0 / math.sqrt(h2))
        g4, b4 = _bn_params(h2)
        w4, bi4 = _linear_params(ks[3], h2, last_out, 0.001)
        return [g1, b1, w1, bi1, g2, b2, w2, bi2,
                g3, b3, w3, bi3, g4, b4, w4, bi4]

    actor = head(keys[0:4], action_size)
    actor += [jnp.full((1, 1), 0.25, jnp.float32),            # PReLU alpha
              jnp.full((1, action_size), 0.3, jnp.float32)]   # std parameter
    critic = head(keys[4:8], 1)
    critic += [jnp.full((1, 1), 0.25, jnp.float32)]           # PReLU alpha
    return actor, critic


def pack_fused_params(actor_params, critic_params, state_size, action_size, hidden):
    """Pack the per-head params into a block-diagonal weight slab and a vector slab."""
    (ag1, ab1, aw1, abi1, ag2, ab2, aw2, abi2,
     ag3, ab3, aw3, abi3, ag4, ab4, aw4, abi4, a_alpha, a_std) = actor_params
    (cg1, cb1, cw1, cbi1, cg2, cb2, cw2, cbi2,
     cg3, cb3, cw3, cbi3, cg4, cb4, cw4, cbi4, c_alpha) = critic_params
    h0, h1, h2 = hidden
    S, A = state_size, action_size
    assert max(S, h0, h1, h2, A) <= HALF, "fused layout requires all widths <= 64"

    d_in = [S, h0, h1, h2]
    d_out_a = [h0, h1, h2, A]
    d_out_c = [h0, h1, h2, 1]
    a_w = [aw1, aw2, aw3, aw4]; c_w = [cw1, cw2, cw3, cw4]
    a_g = [ag1, ag2, ag3, ag4]; c_g = [cg1, cg2, cg3, cg4]
    a_b = [ab1, ab2, ab3, ab4]; c_b = [cb1, cb2, cb3, cb4]
    a_bi = [abi1, abi2, abi3, abi4]; c_bi = [cbi1, cbi2, cbi3, cbi4]

    wslab = jnp.zeros((4, LANES, LANES), jnp.float32)
    pslab = jnp.zeros((16, LANES), jnp.float32)
    for l in range(4):
        din, doa, doc = d_in[l], d_out_a[l], d_out_c[l]
        wslab = wslab.at[l, 0:din, 0:doa].set(a_w[l])
        wslab = wslab.at[l, HALF:HALF + din, HALF:HALF + doc].set(c_w[l])
        pslab = pslab.at[l, 0:din].set(a_g[l][0])
        pslab = pslab.at[l, HALF:HALF + din].set(c_g[l][0])
        pslab = pslab.at[4 + l, 0:din].set(a_b[l][0])
        pslab = pslab.at[4 + l, HALF:HALF + din].set(c_b[l][0])
        pslab = pslab.at[8 + l, 0:doa].set(a_bi[l][0])
        pslab = pslab.at[8 + l, HALF:HALF + doc].set(c_bi[l][0])

    alpha_row = jnp.concatenate([jnp.full((HALF,), a_alpha[0, 0], jnp.float32),
                                 jnp.full((HALF,), c_alpha[0, 0], jnp.float32)])
    pslab = pslab.at[12].set(alpha_row)
    std_row = jnp.ones((LANES,), jnp.float32).at[0:A].set(a_std[0])
    pslab = pslab.at[13].set(std_row)
    return wslab, pslab


# ----------------------------------------------------------------------------
# Pure-JAX reference (mirrors the PyTorch module exactly) for validation
# ----------------------------------------------------------------------------
def _ref_bn(x, g, b):
    m = jnp.mean(x, axis=0, keepdims=True)
    v = jnp.mean((x - m) ** 2, axis=0, keepdims=True)
    return (x - m) * jax.lax.rsqrt(v + BN_EPS) * g + b


def _ref_prelu(x, a):
    return jnp.where(x >= 0.0, x, a * x)


def reference_forward(s, eps, actor_params, critic_params, std_scale=1.0):
    (ag1, ab1, aw1, abi1, ag2, ab2, aw2, abi2,
     ag3, ab3, aw3, abi3, ag4, ab4, aw4, abi4, a_alpha, a_std) = actor_params
    (cg1, cb1, cw1, cbi1, cg2, cb2, cw2, cbi2,
     cg3, cb3, cw3, cbi3, cg4, cb4, cw4, cbi4, c_alpha) = critic_params
    aa = a_alpha[0, 0]
    h = _ref_prelu(_ref_bn(s, ag1, ab1) @ aw1 + abi1, aa)
    h = _ref_prelu(_ref_bn(h, ag2, ab2) @ aw2 + abi2, aa)
    h = _ref_prelu(_ref_bn(h, ag3, ab3) @ aw3 + abi3, aa)
    mean = jnp.tanh(_ref_bn(h, ag4, ab4) @ aw4 + abi4)
    std = jnp.clip(a_std, 0.05, 0.5 * std_scale)
    act = mean + std * eps
    logp = (-(act - mean) ** 2 / (2.0 * std * std)
            - jnp.log(std) - HALF_LOG_2PI).sum(-1)
    ent = jnp.broadcast_to(jnp.mean(0.5 + HALF_LOG_2PI + jnp.log(std), axis=-1),
                           (s.shape[0],))
    ca = c_alpha[0, 0]
    g = _ref_prelu(_ref_bn(s, cg1, cb1) @ cw1 + cbi1, ca)
    g = _ref_prelu(_ref_bn(g, cg2, cb2) @ cw2 + cbi2, ca)
    g = _ref_prelu(_ref_bn(g, cg3, cb3) @ cw3 + cbi3, ca)
    v = _ref_prelu(_ref_bn(g, cg4, cb4) @ cw4 + cbi4, ca)
    return act, logp, ent, v


if __name__ == "__main__":
    B, STATE, ACTION = 8, 32, 8
    HIDDEN = (64, 64, 32)

    root = jax.random.PRNGKey(0)
    k_param, k_state, k_eps = jax.random.split(root, 3)

    actor_params, critic_params = make_params(k_param, STATE, ACTION, HIDDEN)
    wslab, pslab = pack_fused_params(actor_params, critic_params,
                                     STATE, ACTION, HIDDEN)

    s = jax.random.normal(k_state, (B, STATE), jnp.float32)
    eps = jax.random.normal(k_eps, (B, ACTION), jnp.float32)  # dist.sample() noise

    fwd = jax.jit(ppo_actor_critic_forward,
                  static_argnames=("action_size", "std_scale"))
    act, logp, ent, v = fwd(s, eps, wslab, pslab,
                            action_size=ACTION, std_scale=1.0)
    jax.block_until_ready((act, logp, ent, v))

    assert act.shape == (B, ACTION)
    assert logp.shape == (B,)
    assert ent.shape == (B,)
    assert v.shape == (B, 1)

    # Validate against the unfused pure-JAX reference of the PyTorch module.
    r_act, r_logp, r_ent, r_v = reference_forward(
        s, eps, actor_params, critic_params, std_scale=1.0)
    tol = 5e-3
    assert float(jnp.max(jnp.abs(act - r_act))) < tol
    assert float(jnp.max(jnp.abs(logp - r_logp))) < tol
    assert float(jnp.max(jnp.abs(ent - r_ent))) < tol
    assert float(jnp.max(jnp.abs(v - r_v))) < tol

    print("KERNEL_OK")
</pallas_src>

<mosaic_0001>
module attributes {stable_mosaic.version = 11 : i64} {
  func.func @ppo_ac_fused_kernel(%arg0: memref<8x128xf32, #tpu.memory_space<vmem>>, %arg1: memref<8x128xf32, #tpu.memory_space<vmem>>, %arg2: memref<4x128x128xf32, #tpu.memory_space<vmem>>, %arg3: memref<16x128xf32, #tpu.memory_space<vmem>>, %arg4: memref<8x128xf32, #tpu.memory_space<vmem>>) attributes {dimension_semantics = [], scalar_prefetch = 0 : i64, scratch_operands = 0 : i64, tpu.core_type = #tpu.core_type<tc>} {
    %c0 = arith.constant 0 : index
    %c0_0 = arith.constant 0 : index
    %0 = vector.load %arg0[%c0, %c0_0] : memref<8x128xf32, #tpu.memory_space<vmem>>, vector<8x128xf32>
    %c0_1 = arith.constant 0 : index
    %c0_2 = arith.constant 0 : index
    %1 = vector.load %arg1[%c0_1, %c0_2] : memref<8x128xf32, #tpu.memory_space<vmem>>, vector<8x128xf32>
    %c12 = arith.constant 12 : index
    %c0_3 = arith.constant 0 : index
    %2 = vector.load %arg3[%c12, %c0_3] : memref<16x128xf32, #tpu.memory_space<vmem>>, vector<1x128xf32>
    %3 = tpu.iota {dimensions = array<i32: 1>} : vector<1x128xi32>
    %c0_4 = arith.constant 0 : index
    %c0_5 = arith.constant 0 : index
    %4 = vector.load %arg3[%c0_4, %c0_5] : memref<16x128xf32, #tpu.memory_space<vmem>>, vector<1x128xf32>
    %c4 = arith.constant 4 : index
    %c0_6 = arith.constant 0 : index
    %5 = vector.load %arg3[%c4, %c0_6] : memref<16x128xf32, #tpu.memory_space<vmem>>, vector<1x128xf32>
    %c8 = arith.constant 8 : index
    %c0_7 = arith.constant 0 : index
    %6 = vector.load %arg3[%c8, %c0_7] : memref<16x128xf32, #tpu.memory_space<vmem>>, vector<1x128xf32>
    %cst = arith.constant dense<0.000000e+00> : vector<128xf32>
    %7 = vector.multi_reduction <add>, %0, %cst [0] : vector<8x128xf32> to vector<128xf32>
    %8 = vector.shape_cast %7 : vector<128xf32> to vector<1x128xf32>
    %cst_8 = arith.constant 8.000000e+00 : f32
    %9 = vector.broadcast %cst_8 : f32 to vector<1x128xf32>
    %10 = arith.divf %8, %9 : vector<1x128xf32>
    %11 = vector.broadcast %10 : vector<1x128xf32> to vector<8x128xf32>
    %12 = arith.subf %0, %11 : vector<8x128xf32>
    %13 = arith.mulf %12, %12 : vector<8x128xf32>
    %cst_9 = arith.constant dense<0.000000e+00> : vector<128xf32>
    %14 = vector.multi_reduction <add>, %13, %cst_9 [0] : vector<8x128xf32> to vector<128xf32>
    %15 = vector.shape_cast %14 : vector<128xf32> to vector<1x128xf32>
    %cst_10 = arith.constant 8.000000e+00 : f32
    %16 = vector.broadcast %cst_10 : f32 to vector<1x128xf32>
    %17 = arith.divf %15, %16 : vector<1x128xf32>
    %18 = vector.broadcast %10 : vector<1x128xf32> to vector<8x128xf32>
    %19 = arith.subf %0, %18 : vector<8x128xf32>
    %cst_11 = arith.constant 9.99999974E-6 : f32
    %20 = vector.broadcast %cst_11 : f32 to vector<1x128xf32>
    %21 = arith.addf %17, %20 : vector<1x128xf32>
    %22 = math.rsqrt %21 : vector<1x128xf32>
    %23 = vector.broadcast %22 : vector<1x128xf32> to vector<8x128xf32>
    %24 = arith.mulf %19, %23 : vector<8x128xf32>
    %25 = vector.broadcast %4 : vector<1x128xf32> to vector<8x128xf32>
    %26 = arith.mulf %24, %25 : vector<8x128xf32>
    %27 = vector.broadcast %5 : vector<1x128xf32> to vector<8x128xf32>
    %28 = arith.addf %26, %27 : vector<8x128xf32>
    %c0_12 = arith.constant 0 : index
    %c0_13 = arith.constant 0 : index
    %c0_14 = arith.constant 0 : index
    %29 = vector.load %arg2[%c0_12, %c0_13, %c0_14] : memref<4x128x128xf32, #tpu.memory_space<vmem>>, vector<1x128x128xf32>
    %30 = vector.shape_cast %29 : vector<1x128x128xf32> to vector<128x128xf32>
    %cst_15 = arith.constant dense<0.000000e+00> : vector<8x128xf32>
    %31 = tpu.matmul %28, %30, %cst_15 {dimension_numbers = #tpu.dot_dimension_numbers<[1], [0], [0], [1], [0, 0, 1, 1], [], []>} : vector<8x128xf32>, vector<128x128xf32>, vector<8x128xf32> -> vector<8x128xf32>
    %32 = vector.broadcast %6 : vector<1x128xf32> to vector<8x128xf32>
    %33 = arith.addf %31, %32 : vector<8x128xf32>
    %cst_16 = arith.constant 0.000000e+00 : f32
    %34 = vector.broadcast %cst_16 : f32 to vector<8x128xf32>
    %35 = arith.cmpf oge, %33, %34 : vector<8x128xf32>
    %36 = vector.broadcast %2 : vector<1x128xf32> to vector<8x128xf32>
    %37 = arith.mulf %36, %33 : vector<8x128xf32>
    %38 = arith.select %35, %33, %37 : vector<8x128xi1>, vector<8x128xf32>
    %c1 = arith.constant 1 : index
    %c0_17 = arith.constant 0 : index
    %39 = vector.load %arg3[%c1, %c0_17] : memref<16x128xf32, #tpu.memory_space<vmem>>, vector<1x128xf32>
    %c5 = arith.constant 5 : index
    %c0_18 = arith.constant 0 : index
    %40 = vector.load %arg3[%c5, %c0_18] : memref<16x128xf32, #tpu.memory_space<vmem>>, vector<1x128xf32>
    %c9 = arith.constant 9 : index
    %c0_19 = arith.constant 0 : index
    %41 = vector.load %arg3[%c9, %c0_19] : memref<16x128xf32, #tpu.memory_space<vmem>>, vector<1x128xf32>
    %cst_20 = arith.constant dense<0.000000e+00> : vector<128xf32>
    %42 = vector.multi_reduction <add>, %38, %cst_20 [0] : vector<8x128xf32> to vector<128xf32>
    %43 = vector.shape_cast %42 : vector<128xf32> to vector<1x128xf32>
    %cst_21 = arith.constant 8.000000e+00 : f32
    %44 = vector.broadcast %cst_21 : f32 to vector<1x128xf32>
    %45 = arith.divf %43, %44 : vector<1x128xf32>
    %46 = vector.broadcast %45 : vector<1x128xf32> to vector<8x128xf32>
    %47 = arith.subf %38, %46 : vector<8x128xf32>
    %48 = arith.mulf %47, %47 : vector<8x128xf32>
    %cst_22 = arith.constant dense<0.000000e+00> : vector<128xf32>
    %49 = vector.multi_reduction <add>, %48, %cst_22 [0] : vector<8x128xf32> to vector<128xf32>
    %50 = vector.shape_cast %49 : vector<128xf32> to vector<1x128xf32>
    %cst_23 = arith.constant 8.000000e+00 : f32
    %51 = vector.broadcast %cst_23 : f32 to vector<1x128xf32>
    %52 = arith.divf %50, %51 : vector<1x128xf32>
    %53 = vector.broadcast %45 : vector<1x128xf32> to vector<8x128xf32>
    %54 = arith.subf %38, %53 : vector<8x128xf32>
    %cst_24 = arith.constant 9.99999974E-6 : f32
    %55 = vector.broadcast %cst_24 : f32 to vector<1x128xf32>
    %56 = arith.addf %52, %55 : vector<1x128xf32>
    %57 = math.rsqrt %56 : vector<1x128xf32>
    %58 = vector.broadcast %57 : vector<1x128xf32> to vector<8x128xf32>
    %59 = arith.mulf %54, %58 : vector<8x128xf32>
    %60 = vector.broadcast %39 : vector<1x128xf32> to vector<8x128xf32>
    %61 = arith.mulf %59, %60 : vector<8x128xf32>
    %62 = vector.broadcast %40 : vector<1x128xf32> to vector<8x128xf32>
    %63 = arith.addf %61, %62 : vector<8x128xf32>
    %c1_25 = arith.constant 1 : index
    %c0_26 = arith.constant 0 : index
    %c0_27 = arith.constant 0 : index
    %64 = vector.load %arg2[%c1_25, %c0_26, %c0_27] : memref<4x128x128xf32, #tpu.memory_space<vmem>>, vector<1x128x128xf32>
    %65 = vector.shape_cast %64 : vector<1x128x128xf32> to vector<128x128xf32>
    %cst_28 = arith.constant dense<0.000000e+00> : vector<8x128xf32>
    %66 = tpu.matmul %63, %65, %cst_28 {dimension_numbers = #tpu.dot_dimension_numbers<[1], [0], [0], [1], [0, 0, 1, 1], [], []>} : vector<8x128xf32>, vector<128x128xf32>, vector<8x128xf32> -> vector<8x128xf32>
    %67 = vector.broadcast %41 : vector<1x128xf32> to vector<8x128xf32>
    %68 = arith.addf %66, %67 : vector<8x128xf32>
    %cst_29 = arith.constant 0.000000e+00 : f32
    %69 = vector.broadcast %cst_29 : f32 to vector<8x128xf32>
    %70 = arith.cmpf oge, %68, %69 : vector<8x128xf32>
    %71 = vector.broadcast %2 : vector<1x128xf32> to vector<8x128xf32>
    %72 = arith.mulf %71, %68 : vector<8x128xf32>
    %73 = arith.select %70, %68, %72 : vector<8x128xi1>, vector<8x128xf32>
    %c2 = arith.constant 2 : index
    %c0_30 = arith.constant 0 : index
    %74 = vector.load %arg3[%c2, %c0_30] : memref<16x128xf32, #tpu.memory_space<vmem>>, vector<1x128xf32>
    %c6 = arith.constant 6 : index
    %c0_31 = arith.constant 0 : index
    %75 = vector.load %arg3[%c6, %c0_31] : memref<16x128xf32, #tpu.memory_space<vmem>>, vector<1x128xf32>
    %c10 = arith.constant 10 : index
    %c0_32 = arith.constant 0 : index
    %76 = vector.load %arg3[%c10, %c0_32] : memref<16x128xf32, #tpu.memory_space<vmem>>, vector<1x128xf32>
    %cst_33 = arith.constant dense<0.000000e+00> : vector<128xf32>
    %77 = vector.multi_reduction <add>, %73, %cst_33 [0] : vector<8x128xf32> to vector<128xf32>
    %78 = vector.shape_cast %77 : vector<128xf32> to vector<1x128xf32>
    %cst_34 = arith.constant 8.000000e+00 : f32
    %79 = vector.broadcast %cst_34 : f32 to vector<1x128xf32>
    %80 = arith.divf %78, %79 : vector<1x128xf32>
    %81 = vector.broadcast %80 : vector<1x128xf32> to vector<8x128xf32>
    %82 = arith.subf %73, %81 : vector<8x128xf32>
    %83 = arith.mulf %82, %82 : vector<8x128xf32>
    %cst_35 = arith.constant dense<0.000000e+00> : vector<128xf32>
    %84 = vector.multi_reduction <add>, %83, %cst_35 [0] : vector<8x128xf32> to vector<128xf32>
    %85 = vector.shape_cast %84 : vector<128xf32> to vector<1x128xf32>
    %cst_36 = arith.constant 8.000000e+00 : f32
    %86 = vector.broadcast %cst_36 : f32 to vector<1x128xf32>
    %87 = arith.divf %85, %86 : vector<1x128xf32>
    %88 = vector.broadcast %80 : vector<1x128xf32> to vector<8x128xf32>
    %89 = arith.subf %73, %88 : vector<8x128xf32>
    %cst_37 = arith.constant 9.99999974E-6 : f32
    %90 = vector.broadcast %cst_37 : f32 to vector<1x128xf32>
    %91 = arith.addf %87, %90 : vector<1x128xf32>
    %92 = math.rsqrt %91 : vector<1x128xf32>
    %93 = vector.broadcast %92 : vector<1x128xf32> to vector<8x128xf32>
    %94 = arith.mulf %89, %93 : vector<8x128xf32>
    %95 = vector.broadcast %74 : vector<1x128xf32> to vector<8x128xf32>
    %96 = arith.mulf %94, %95 : vector<8x128xf32>
    %97 = vector.broadcast %75 : vector<1x128xf32> to vector<8x128xf32>
    %98 = arith.addf %96, %97 : vector<8x128xf32>
    %c2_38 = arith.constant 2 : index
    %c0_39 = arith.constant 0 : index
    %c0_40 = arith.constant 0 : index
    %99 = vector.load %arg2[%c2_38, %c0_39, %c0_40] : memref<4x128x128xf32, #tpu.memory_space<vmem>>, vector<1x128x128xf32>
    %100 = vector.shape_cast %99 : vector<1x128x128xf32> to vector<128x128xf32>
    %cst_41 = arith.constant dense<0.000000e+00> : vector<8x128xf32>
    %101 = tpu.matmul %98, %100, %cst_41 {dimension_numbers = #tpu.dot_dimension_numbers<[1], [0], [0], [1], [0, 0, 1, 1], [], []>} : vector<8x128xf32>, vector<128x128xf32>, vector<8x128xf32> -> vector<8x128xf32>
    %102 = vector.broadcast %76 : vector<1x128xf32> to vector<8x128xf32>
    %103 = arith.addf %101, %102 : vector<8x128xf32>
    %cst_42 = arith.constant 0.000000e+00 : f32
    %104 = vector.broadcast %cst_42 : f32 to vector<8x128xf32>
    %105 = arith.cmpf oge, %103, %104 : vector<8x128xf32>
    %106 = vector.broadcast %2 : vector<1x128xf32> to vector<8x128xf32>
    %107 = arith.mulf %106, %103 : vector<8x128xf32>
    %108 = arith.select %105, %103, %107 : vector<8x128xi1>, vector<8x128xf32>
    %c3 = arith.constant 3 : index
    %c0_43 = arith.constant 0 : index
    %109 = vector.load %arg3[%c3, %c0_43] : memref<16x128xf32, #tpu.memory_space<vmem>>, vector<1x128xf32>
    %c7 = arith.constant 7 : index
    %c0_44 = arith.constant 0 : index
    %110 = vector.load %arg3[%c7, %c0_44] : memref<16x128xf32, #tpu.memory_space<vmem>>, vector<1x128xf32>
    %c11 = arith.constant 11 : index
    %c0_45 = arith.constant 0 : index
    %111 = vector.load %arg3[%c11, %c0_45] : memref<16x128xf32, #tpu.memory_space<vmem>>, vector<1x128xf32>
    %cst_46 = arith.constant dense<0.000000e+00> : vector<128xf32>
    %112 = vector.multi_reduction <add>, %108, %cst_46 [0] : vector<8x128xf32> to vector<128xf32>
    %113 = vector.shape_cast %112 : vector<128xf32> to vector<1x128xf32>
    %cst_47 = arith.constant 8.000000e+00 : f32
    %114 = vector.broadcast %cst_47 : f32 to vector<1x128xf32>
    %115 = arith.divf %113, %114 : vector<1x128xf32>
    %116 = vector.broadcast %115 : vector<1x128xf32> to vector<8x128xf32>
    %117 = arith.subf %108, %116 : vector<8x128xf32>
    %118 = arith.mulf %117, %117 : vector<8x128xf32>
    %cst_48 = arith.constant dense<0.000000e+00> : vector<128xf32>
    %119 = vector.multi_reduction <add>, %118, %cst_48 [0] : vector<8x128xf32> to vector<128xf32>
    %120 = vector.shape_cast %119 : vector<128xf32> to vector<1x128xf32>
    %cst_49 = arith.constant 8.000000e+00 : f32
    %121 = vector.broadcast %cst_49 : f32 to vector<1x128xf32>
    %122 = arith.divf %120, %121 : vector<1x128xf32>
    %123 = vector.broadcast %115 : vector<1x128xf32> to vector<8x128xf32>
    %124 = arith.subf %108, %123 : vector<8x128xf32>
    %cst_50 = arith.constant 9.99999974E-6 : f32
    %125 = vector.broadcast %cst_50 : f32 to vector<1x128xf32>
    %126 = arith.addf %122, %125 : vector<1x128xf32>
    %127 = math.rsqrt %126 : vector<1x128xf32>
    %128 = vector.broadcast %127 : vector<1x128xf32> to vector<8x128xf32>
    %129 = arith.mulf %124, %128 : vector<8x128xf32>
    %130 = vector.broadcast %109 : vector<1x128xf32> to vector<8x128xf32>
    %131 = arith.mulf %129, %130 : vector<8x128xf32>
    %132 = vector.broadcast %110 : vector<1x128xf32> to vector<8x128xf32>
    %133 = arith.addf %131, %132 : vector<8x128xf32>
    %c3_51 = arith.constant 3 : index
    %c0_52 = arith.constant 0 : index
    %c0_53 = arith.constant 0 : index
    %134 = vector.load %arg2[%c3_51, %c0_52, %c0_53] : memref<4x128x128xf32, #tpu.memory_space<vmem>>, vector<1x128x128xf32>
    %135 = vector.shape_cast %134 : vector<1x128x128xf32> to vector<128x128xf32>
    %cst_54 = arith.constant dense<0.000000e+00> : vector<8x128xf32>
    %136 = tpu.matmul %133, %135, %cst_54 {dimension_numbers = #tpu.dot_dimension_numbers<[1], [0], [0], [1], [0, 0, 1, 1], [], []>} : vector<8x128xf32>, vector<128x128xf32>, vector<8x128xf32> -> vector<8x128xf32>
    %137 = vector.broadcast %111 : vector<1x128xf32> to vector<8x128xf32>
    %138 = arith.addf %136, %137 : vector<8x128xf32>
    %c64_i32 = arith.constant 64 : i32
    %139 = vector.broadcast %c64_i32 : i32 to vector<1x128xi32>
    %140 = arith.cmpi slt, %3, %139 : vector<1x128xi32>
    %141 = math.tanh %138 : vector<8x128xf32>
    %cst_55 = arith.constant 0.000000e+00 : f32
    %142 = vector.broadcast %cst_55 : f32 to vector<8x128xf32>
    %143 = arith.cmpf oge, %138, %142 : vector<8x128xf32>
    %144 = vector.broadcast %2 : vector<1x128xf32> to vector<8x128xf32>
    %145 = arith.mulf %144, %138 : vector<8x128xf32>
    %146 = arith.select %143, %138, %145 : vector<8x128xi1>, vector<8x128xf32>
    %147 = vector.shape_cast %140 : vector<1x128xi1> to vector<1x128xi1>
    %148 = vector.broadcast %147 : vector<1x128xi1> to vector<8x128xi1>
    %149 = arith.select %148, %141, %146 : vector<8x128xi1>, vector<8x128xf32>
    %c8_i32 = arith.constant 8 : i32
    %150 = vector.broadcast %c8_i32 : i32 to vector<1x128xi32>
    %151 = arith.cmpi slt, %3, %150 : vector<1x128xi32>
    %c13 = arith.constant 13 : index
    %c0_56 = arith.constant 0 : index
    %152 = vector.load %arg3[%c13, %c0_56] : memref<16x128xf32, #tpu.memory_space<vmem>>, vector<1x128xf32>
    %cst_57 = arith.constant 5.000000e-02 : f32
    %cst_58 = arith.constant 5.000000e-01 : f32
    %153 = vector.broadcast %cst_57 : f32 to vector<1x128xf32>
    %154 = arith.maximumf %153, %152 : vector<1x128xf32>
    %155 = vector.broadcast %cst_58 : f32 to vector<1x128xf32>
    %156 = arith.minimumf %155, %154 : vector<1x128xf32>
    %157 = math.log %156 : vector<1x128xf32>
    %cst_59 = arith.constant 0.000000e+00 : f32
    %158 = vector.shape_cast %151 : vector<1x128xi1> to vector<1x128xi1>
    %159 = vector.broadcast %158 : vector<1x128xi1> to vector<8x128xi1>
    %160 = vector.broadcast %cst_59 : f32 to vector<8x128xf32>
    %161 = arith.select %159, %149, %160 : vector<8x128xi1>, vector<8x128xf32>
    %162 = vector.broadcast %156 : vector<1x128xf32> to vector<8x128xf32>
    %163 = arith.mulf %162, %1 : vector<8x128xf32>
    %164 = arith.addf %149, %163 : vector<8x128xf32>
    %cst_60 = arith.constant 0.000000e+00 : f32
    %165 = vector.shape_cast %151 : vector<1x128xi1> to vector<1x128xi1>
    %166 = vector.broadcast %165 : vector<1x128xi1> to vector<8x128xi1>
    %167 = vector.broadcast %cst_60 : f32 to vector<8x128xf32>
    %168 = arith.select %166, %164, %167 : vector<8x128xi1>, vector<8x128xf32>
    %169 = arith.subf %168, %161 : vector<8x128xf32>
    %170 = arith.mulf %169, %169 : vector<8x128xf32>
    %cst_61 = arith.constant 0.000000e+00 : f32
    %171 = vector.broadcast %cst_61 : f32 to vector<8x128xf32>
    %172 = arith.subf %171, %170 : vector<8x128xf32>
    %cst_62 = arith.constant 2.000000e+00 : f32
    %173 = vector.broadcast %cst_62 : f32 to vector<1x128xf32>
    %174 = arith.mulf %173, %156 : vector<1x128xf32>
    %175 = arith.mulf %174, %156 : vector<1x128xf32>
    %176 = vector.broadcast %175 : vector<1x128xf32> to vector<8x128xf32>
    %177 = arith.divf %172, %176 : vector<8x128xf32>
    %178 = vector.broadcast %157 : vector<1x128xf32> to vector<8x128xf32>
    %179 = arith.subf %177, %178 : vector<8x128xf32>
    %cst_63 = arith.constant 0.918938517 : f32
    %180 = vector.broadcast %cst_63 : f32 to vector<8x128xf32>
    %181 = arith.subf %179, %180 : vector<8x128xf32>
    %cst_64 = arith.constant 0.000000e+00 : f32
    %182 = vector.shape_cast %151 : vector<1x128xi1> to vector<1x128xi1>
    %183 = vector.broadcast %182 : vector<1x128xi1> to vector<8x128xi1>
    %184 = vector.broadcast %cst_64 : f32 to vector<8x128xf32>
    %185 = arith.select %183, %181, %184 : vector<8x128xi1>, vector<8x128xf32>
    %cst_65 = arith.constant dense<0.000000e+00> : vector<8xf32>
    %186 = vector.multi_reduction <add>, %185, %cst_65 [1] : vector<8x128xf32> to vector<8xf32>
    %187 = vector.shape_cast %186 : vector<8xf32> to vector<8x1xf32>
    %cst_66 = arith.constant 1.41893852 : f32
    %188 = vector.broadcast %cst_66 : f32 to vector<1x128xf32>
    %189 = arith.addf %188, %157 : vector<1x128xf32>
    %cst_67 = arith.constant 0.000000e+00 : f32
    %190 = vector.broadcast %cst_67 : f32 to vector<1x128xf32>
    %191 = arith.select %151, %189, %190 : vector<1x128xi1>, vector<1x128xf32>
    %cst_68 = arith.constant dense<0.000000e+00> : vector<1xf32>
    %192 = vector.multi_reduction <add>, %191, %cst_68 [1] : vector<1x128xf32> to vector<1xf32>
    %193 = vector.shape_cast %192 : vector<1xf32> to vector<1x1xf32>
    %cst_69 = arith.constant 8.000000e+00 : f32
    %194 = vector.broadcast %cst_69 : f32 to vector<1x1xf32>
    %195 = arith.divf %193, %194 : vector<1x1xf32>
    %196 = vector.extract_strided_slice %149 {offsets = [0, 64], sizes = [8, 1], strides = [1, 1]} : vector<8x128xf32> to vector<8x1xf32>
    %c8_i32_70 = arith.constant 8 : i32
    %197 = vector.broadcast %c8_i32_70 : i32 to vector<1x128xi32>
    %198 = arith.cmpi eq, %3, %197 : vector<1x128xi32>
    %199 = vector.shape_cast %198 : vector<1x128xi1> to vector<1x128xi1>
    %200 = vector.broadcast %199 : vector<1x128xi1> to vector<8x128xi1>
    %201 = vector.shape_cast %187 : vector<8x1xf32> to vector<8x1xf32>
    %202 = vector.broadcast %201 : vector<8x1xf32> to vector<8x128xf32>
    %203 = arith.select %200, %202, %168 : vector<8x128xi1>, vector<8x128xf32>
    %c9_i32 = arith.constant 9 : i32
    %204 = vector.broadcast %c9_i32 : i32 to vector<1x128xi32>
    %205 = arith.cmpi eq, %3, %204 : vector<1x128xi32>
    %206 = vector.shape_cast %205 : vector<1x128xi1> to vector<1x128xi1>
    %207 = vector.broadcast %206 : vector<1x128xi1> to vector<8x128xi1>
    %208 = vector.shape_cast %195 : vector<1x1xf32> to vector<1x1xf32>
    %209 = vector.broadcast %208 : vector<1x1xf32> to vector<8x128xf32>
    %210 = arith.select %207, %209, %203 : vector<8x128xi1>, vector<8x128xf32>
    %c10_i32 = arith.constant 10 : i32
    %211 = vector.broadcast %c10_i32 : i32 to vector<1x128xi32>
    %212 = arith.cmpi eq, %3, %211 : vector<1x128xi32>
    %213 = vector.shape_cast %212 : vector<1x128xi1> to vector<1x128xi1>
    %214 = vector.broadcast %213 : vector<1x128xi1> to vector<8x128xi1>
    %215 = vector.shape_cast %196 : vector<8x1xf32> to vector<8x1xf32>
    %216 = vector.broadcast %215 : vector<8x1xf32> to vector<8x128xf32>
    %217 = arith.select %214, %216, %210 : vector<8x128xi1>, vector<8x128xf32>
    %c0_71 = arith.constant 0 : index
    %c0_72 = arith.constant 0 : index
    %218 = vector.load %arg4[%c0_71, %c0_72] : memref<8x128xf32, #tpu.memory_space<vmem>>, vector<8x128xf32>
    tpu.vector_store %arg4[%c0_71, %c0_72], %217 {strides = array<i32>} : memref<8x128xf32, #tpu.memory_space<vmem>>, vector<8x128xf32>,
    return
  }
}

</mosaic_0001>

<llo_original>
// kernel: ppo_actor_critic_forward.1
$region0: #{ppo_actor_critic_forward.1}
  #allocation0 [shape = 'u32[]', space=smem, size = 0x4, offset = 0x4, fixed_abs, tag = 'smem constant byte address 0x4 - core index']
  #allocation1 [shape = 'u32[144,128]{1,0:T(1,128)}', space=vmem, size = 0x12000, scoped, tag = 'internal scratch']
  %s0 = inlined_call_operand.vmem [shape: f32[8,128], index: 0, kind: input, shape index: {}]
  %s1 = inlined_call_operand.vmem [shape: f32[8,128], index: 1, kind: input, shape index: {}]
  %s2 = inlined_call_operand.hbm [shape: f32[4,128,128], index: 2, kind: input, shape index: {}]
  %s3 = inlined_call_operand.vmem [shape: f32[16,128], index: 3, kind: input, shape index: {}]
  %s4 = inlined_call_operand.vmem [shape: f32[8,128], index: 4, kind: output, shape index: {}]
  %s5 = sld [smem:[#allocation0]]
  $region30: #{ppo_actor_critic_forward.1} parent=0
    _
  %s7 = ssub.s32 1, %s5
  %s8 = scalar_select 0, %s7, %s5
  $region1: #{ppo_actor_critic_forward.1} parent=0
    #allocation2 [shape = 'u8[262144]{0}', space=vmem, size = 0x40000, scoped, tag = 'input window, operand 2, single buffered']
    #allocation3 [shape = 's32[1]{0}', space=sflag, size = 0x4, scoped, tag = 'scoped memory for ppo_actor_critic_forward.1']
    %9 = vsyncpa [#allocation3], 0
    // Predicated region
    $region2: #{ppo_actor_critic_forward.1} parent=1 // pred_check
      _
    $region3: #{ppo_actor_critic_forward.1} parent=1 // pred_check_branch
      %11 = sbr.rel (0) target = $region5
    $region4: #{ppo_actor_critic_forward.1} parent=1 // pred_region
      _
    $region5: #{ppo_actor_critic_forward.1} parent=1 // pred_fallthru
      _
    // Predicated region
    $region6: #{ppo_actor_critic_forward.1} parent=1 // pred_check
      _
    $region7: #{ppo_actor_critic_forward.1} parent=1 // pred_check_branch
      %13 = sbr.rel (0) target = $region9
    $region8: #{ppo_actor_critic_forward.1} parent=1 // pred_region
      _
    $region9: #{ppo_actor_critic_forward.1} parent=1 // pred_fallthru
      _
    // Predicated region
    $region10: #{ppo_actor_critic_forward.1} parent=1 // pred_check
      _
    $region11: #{ppo_actor_critic_forward.1} parent=1 // pred_check_branch
      %15 = sbr.rel (0) target = $region13
    $region12: #{ppo_actor_critic_forward.1} parent=1 // pred_region
      %s17 = ssub.s32 8192, 8192
      %18 = vsyncadd [#allocation3], %s17
      %s19 = sshll.u32 [#allocation2], 4
      %s20 = int_to_ptr.vmem [resolvable:$true] %s19
      %25 = dma.hbm_to_vmem [thread:$0]  %s2, 8192, %s20, [#allocation3], 128, 128, 8
    $region13: #{ppo_actor_critic_forward.1} parent=1 // pred_fallthru
      _
    // Predicated region
    $region14: #{ppo_actor_critic_forward.1} parent=1 // pred_check
      _
    $region15: #{ppo_actor_critic_forward.1} parent=1 // pred_check_branch
      %27 = sbr.rel (0) target = $region17
    $region16: #{ppo_actor_critic_forward.1} parent=1 // pred_region
      _
    $region17: #{ppo_actor_critic_forward.1} parent=1 // pred_fallthru
      _
    // Predicated region
    $region18: #{ppo_actor_critic_forward.1} parent=1 // pred_check
      _
    $region19: #{ppo_actor_critic_forward.1} parent=1 // pred_check_branch
      %29 = sbr.rel (0) target = $region21
    $region20: #{ppo_actor_critic_forward.1} parent=1 // pred_region
      %30 = dma.done [#allocation3], 8192
    $region21: #{ppo_actor_critic_forward.1} parent=1 // pred_fallthru
      _
    %v31 = vld [vmem:[%s0] sm:$0xff]
    %v32 = vld [vmem:[%s1] sm:$0xff]
    %v33 = vld [vmem:[%s3 + $0xc] sm:$0x1]
    %v34 = vlaneseq
    %v35 = vand.u32 %v34, 127
    %v36 = vld [vmem:[%s3] sm:$0x1]
    %v37 = vld [vmem:[%s3 + $0x4] sm:$0x1]
    %v38 = vld [vmem:[%s3 + $0x8] sm:$0x1]
    %v39 = vrot.slane %v31, 4
    %v40 = vadd.f32 %v31, %v39
    %v41 = vrot.slane %v40, 2
    %v42 = vadd.f32 %v40, %v41
    %v43 = vrot.slane %v42, 1
    %v44 = vadd.f32 %v42, %v43
    %v45 = vrcp.pop 8.0
    %v46 = vmul.f32 %v44, %v45
    %v47 = vsub.f32 %v31, %v46
    %v48 = vmul.f32 %v47, %v47
    %v49 = vrot.slane %v48, 4
    %v50 = vadd.f32 %v48, %v49
    %v51 = vrot.slane %v50, 2
    %v52 = vadd.f32 %v50, %v51
    %v53 = vrot.slane %v52, 1
    %v54 = vadd.f32 %v52, %v53
    %v55 = vmul.f32 %v54, %v45
    %v56 = vadd.f32 %v55, 1e-05
    %v57 = vrsqrt.pop %v56
    %v58 = vmul.f32 %v47, %v57
    %v59 = vlaneseq
    %v60 = vshrl.u32 %v59, 7
    %v61 = vsub.s32 0, %v60
    %v62 = vrot.slane %v36, %v61
    %v63 = vmul.f32 %v58, %v62
    %v64 = vlaneseq
    %v65 = vshrl.u32 %v64, 7
    %v66 = vsub.s32 0, %v65
    %v67 = vrot.slane %v37, %v66
    %v68 = vadd.f32 %v63, %v67
    %v69 = vld [vmem:[#allocation2] sm:$0xff]
    %v70 = vld [vmem:[#allocation2 + $0x8] sm:$0xff]
    %v71 = vld [vmem:[#allocation2 + $0x10] sm:$0xff]
    %v72 = vld [vmem:[#allocation2 + $0x18] sm:$0xff]
    %v73 = vld [vmem:[#allocation2 + $0x20] sm:$0xff]
    %v74 = vld [vmem:[#allocation2 + $0x28] sm:$0xff]
    %v75 = vld [vmem:[#allocation2 + $0x30] sm:$0xff]
    %v76 = vld [vmem:[#allocation2 + $0x38] sm:$0xff]
    %v77 = vld [vmem:[#allocation2 + $0x40] sm:$0xff]
    %v78 = vld [vmem:[#allocation2 + $0x48] sm:$0xff]
    %v79 = vld [vmem:[#allocation2 + $0x50] sm:$0xff]
    %v80 = vld [vmem:[#allocation2 + $0x58] sm:$0xff]
    %v81 = vld [vmem:[#allocation2 + $0x60] sm:$0xff]
    %v82 = vld [vmem:[#allocation2 + $0x68] sm:$0xff]
    %v83 = vld [vmem:[#allocation2 + $0x70] sm:$0xff]
    %v84 = vld [vmem:[#allocation2 + $0x78] sm:$0xff]
    %v85 = vlaneseq
    %v86 = vshrl.u32 %v85, 7
    %v87 = vsub.s32 0, %v86
    %v88 = vrot.slane %v38, %v87
    %89 = vmatprep.subr.mxu0 0.0
    %90 = vmatpush1.msra.mxu0 %v84
    %91 = vmatprep.subr.mxu0 0.0
    %92 = vmatpush1.msra.mxu0 %v83
    %93 = vmatprep.subr.mxu0 0.0
    %94 = vmatpush1.msra.mxu0 %v82
    %95 = vmatprep.subr.mxu0 0.0
    %96 = vmatpush1.msra.mxu0 %v81
    %97 = vmatprep.subr.mxu0 0.0
    %98 = vmatpush1.msra.mxu0 %v80
    %99 = vmatprep.subr.mxu0 0.0
    %100 = vmatpush1.msra.mxu0 %v79
    %101 = vmatprep.subr.mxu0 0.0
    %102 = vmatpush1.msra.mxu0 %v78
    %103 = vmatprep.subr.mxu0 0.0
    %104 = vmatpush1.msra.mxu0 %v77
    %105 = vmatprep.subr.mxu0 0.0
    %106 = vmatpush1.msra.mxu0 %v76
    %107 = vmatprep.subr.mxu0 0.0
    %108 = vmatpush1.msra.mxu0 %v75
    %109 = vmatprep.subr.mxu0 0.0
    %110 = vmatpush1.msra.mxu0 %v74
    %111 = vmatprep.subr.mxu0 0.0
    %112 = vmatpush1.msra.mxu0 %v73
    %113 = vmatprep.subr.mxu0 0.0
    %114 = vmatpush1.msra.mxu0 %v72
    %115 = vmatprep.subr.mxu0 0.0
    %116 = vmatpush1.msra.mxu0 %v71
    %117 = vmatprep.subr.mxu0 0.0
    %118 = vmatpush1.msra.mxu0 %v70
    %119 = vmatprep.subr.mxu0 0.0
    %120 = vmatpush1.msra.mxu0 %v69
    %121 = vmatprep.subr.mxu0 0.0
    %122 = vmatpush2.msra.mxu0 0.0
    %123 = vmatprep.subr.mxu0 0.0
    %124 = vmatpush2.msra.mxu0 0.0
    %125 = vmatprep.subr.mxu0 0.0
    %126 = vmatpush2.msra.mxu0 0.0
    %127 = vmatprep.subr.mxu0 0.0
    %128 = vmatpush2.msra.mxu0 0.0
    %129 = vmatprep.subr.mxu0 0.0
    %130 = vmatpush2.msra.mxu0 0.0
    %131 = vmatprep.subr.mxu0 0.0
    %132 = vmatpush2.msra.mxu0 0.0
    %133 = vmatprep.subr.mxu0 0.0
    %134 = vmatpush2.msra.mxu0 0.0
    %135 = vmatprep.subr.mxu0 0.0
    %136 = vmatpush2.msra.mxu0 0.0
    %137 = vmatprep.subr.mxu0 0.0
    %138 = vmatpush2.msra.mxu0 0.0
    %139 = vmatprep.subr.mxu0 0.0
    %140 = vmatpush2.msra.mxu0 0.0
    %141 = vmatprep.subr.mxu0 0.0
    %142 = vmatpush2.msra.mxu0 0.0
    %143 = vmatprep.subr.mxu0 0.0
    %144 = vmatpush2.msra.mxu0 0.0
    %145 = vmatprep.subr.mxu0 0.0
    %146 = vmatpush2.msra.mxu0 0.0
    %147 = vmatprep.subr.mxu0 0.0
    %148 = vmatpush2.msra.mxu0 0.0
    %149 = vmatprep.subr.mxu0 0.0
    %150 = vmatpush2.msra.mxu0 0.0
    %151 = vmatprep.subr.mxu0 0.0
    %152 = vmatpush2.msra.mxu0 0.0
    %153 = vmatprep.mubr.f32.mxu0 0.0
    %154 = vmatmul.mubr.f32.gmra.mxu0 %v68
    %v155 = vpop.f32.mrf.mxu0
    %v156 = vadd.f32 %v88, %v155
    %v157 = vpop.f32.mrf.mxu0
    %158 = vdwg.mxu0
    %vm159 = vcmp.ge.f32.partialorder %v156, 0.0
    %v160 = vlaneseq
    %v161 = vshrl.u32 %v160, 7
    %v162 = vsub.s32 0, %v161
    %v163 = vrot.slane %v33, %v162
    %v164 = vmul.f32 %v163, %v156
    %v165 = vsel %vm159, %v156, %v164
    %v166 = vld [vmem:[%s3 + $0x1] sm:$0x1]
    %v167 = vld [vmem:[%s3 + $0x5] sm:$0x1]
    %v168 = vld [vmem:[%s3 + $0x9] sm:$0x1]
    %v169 = vrot.slane %v165, 4
    %v170 = vadd.f32 %v165, %v169
    %v171 = vrot.slane %v170, 2
    %v172 = vadd.f32 %v170, %v171
    %v173 = vrot.slane %v172, 1
    %v174 = vadd.f32 %v172, %v173
    %v175 = vmul.f32 %v174, %v45
    %v176 = vsub.f32 %v165, %v175
    %v177 = vmul.f32 %v176, %v176
    %v178 = vrot.slane %v177, 4
    %v179 = vadd.f32 %v177, %v178
    %v180 = vrot.slane %v179, 2
    %v181 = vadd.f32 %v179, %v180
    %v182 = vrot.slane %v181, 1
    %v183 = vadd.f32 %v181, %v182
    %v184 = vmul.f32 %v183, %v45
    %v185 = vadd.f32 %v184, 1e-05
    %v186 = vrsqrt.pop %v185
    %v187 = vmul.f32 %v176, %v186
    %v188 = vlaneseq
    %v189 = vshrl.u32 %v188, 7
    %v190 = vsub.s32 0, %v189
    %v191 = vrot.slane %v166, %v190
    %v192 = vmul.f32 %v187, %v191
    %v193 = vlaneseq
    %v194 = vshrl.u32 %v193, 7
    %v195 = vsub.s32 0, %v194
    %v196 = vrot.slane %v167, %v195
    %v197 = vadd.f32 %v192, %v196
    %s198 = scalar_lea.vmem [#allocation2], 128
    %v199 = vld [vmem:[%s198] sm:$0xff]
    %v200 = vld [vmem:[%s198 + $0x8] sm:$0xff]
    %v201 = vld [vmem:[%s198 + $0x10] sm:$0xff]
    %v202 = vld [vmem:[%s198 + $0x18] sm:$0xff]
    %v203 = vld [vmem:[%s198 + $0x20] sm:$0xff]
    %v204 = vld [vmem:[%s198 + $0x28] sm:$0xff]
    %v205 = vld [vmem:[%s198 + $0x30] sm:$0xff]
    %v206 = vld [vmem:[%s198 + $0x38] sm:$0xff]
    %v207 = vld [vmem:[%s198 + $0x40] sm:$0xff]
    %v208 = vld [vmem:[%s198 + $0x48] sm:$0xff]
    %v209 = vld [vmem:[%s198 + $0x50] sm:$0xff]
    %v210 = vld [vmem:[%s198 + $0x58] sm:$0xff]
    %v211 = vld [vmem:[%s198 + $0x60] sm:$0xff]
    %v212 = vld [vmem:[%s198 + $0x68] sm:$0xff]
    %v213 = vld [vmem:[%s198 + $0x70] sm:$0xff]
    %v214 = vld [vmem:[%s198 + $0x78] sm:$0xff]
    %v215 = vlaneseq
    %v216 = vshrl.u32 %v215, 7
    %v217 = vsub.s32 0, %v216
    %v218 = vrot.slane %v168, %v217
    %219 = vmatprep.subr.mxu0 0.0
    %220 = vmatpush1.msra.mxu0 %v214
    %221 = vmatprep.subr.mxu0 0.0
    %222 = vmatpush1.msra.mxu0 %v213
    %223 = vmatprep.subr.mxu0 0.0
    %224 = vmatpush1.msra.mxu0 %v212
    %225 = vmatprep.subr.mxu0 0.0
    %226 = vmatpush1.msra.mxu0 %v211
    %227 = vmatprep.subr.mxu0 0.0
    %228 = vmatpush1.msra.mxu0 %v210
    %229 = vmatprep.subr.mxu0 0.0
    %230 = vmatpush1.msra.mxu0 %v209
    %231 = vmatprep.subr.mxu0 0.0
    %232 = vmatpush1.msra.mxu0 %v208
    %233 = vmatprep.subr.mxu0 0.0
    %234 = vmatpush1.msra.mxu0 %v207
    %235 = vmatprep.subr.mxu0 0.0
    %236 = vmatpush1.msra.mxu0 %v206
    %237 = vmatprep.subr.mxu0 0.0
    %238 = vmatpush1.msra.mxu0 %v205
    %239 = vmatprep.subr.mxu0 0.0
    %240 = vmatpush1.msra.mxu0 %v204
    %241 = vmatprep.subr.mxu0 0.0
    %242 = vmatpush1.msra.mxu0 %v203
    %243 = vmatprep.subr.mxu0 0.0
    %244 = vmatpush1.msra.mxu0 %v202
    %245 = vmatprep.subr.mxu0 0.0
    %246 = vmatpush1.msra.mxu0 %v201
    %247 = vmatprep.subr.mxu0 0.0
    %248 = vmatpush1.msra.mxu0 %v200
    %249 = vmatprep.subr.mxu0 0.0
    %250 = vmatpush1.msra.mxu0 %v199
    %251 = vmatprep.subr.mxu0 0.0
    %252 = vmatpush2.msra.mxu0 0.0
    %253 = vmatprep.subr.mxu0 0.0
    %254 = vmatpush2.msra.mxu0 0.0
    %255 = vmatprep.subr.mxu0 0.0
    %256 = vmatpush2.msra.mxu0 0.0
    %257 = vmatprep.subr.mxu0 0.0
    %258 = vmatpush2.msra.mxu0 0.0
    %259 = vmatprep.subr.mxu0 0.0
    %260 = vmatpush2.msra.mxu0 0.0
    %261 = vmatprep.subr.mxu0 0.0
    %262 = vmatpush2.msra.mxu0 0.0
    %263 = vmatprep.subr.mxu0 0.0
    %264 = vmatpush2.msra.mxu0 0.0
    %265 = vmatprep.subr.mxu0 0.0
    %266 = vmatpush2.msra.mxu0 0.0
    %267 = vmatprep.subr.mxu0 0.0
    %268 = vmatpush2.msra.mxu0 0.0
    %269 = vmatprep.subr.mxu0 0.0
    %270 = vmatpush2.msra.mxu0 0.0
    %271 = vmatprep.subr.mxu0 0.0
    %272 = vmatpush2.msra.mxu0 0.0
    %273 = vmatprep.subr.mxu0 0.0
    %274 = vmatpush2.msra.mxu0 0.0
    %275 = vmatprep.subr.mxu0 0.0
    %276 = vmatpush2.msra.mxu0 0.0
    %277 = vmatprep.subr.mxu0 0.0
    %278 = vmatpush2.msra.mxu0 0.0
    %279 = vmatprep.subr.mxu0 0.0
    %280 = vmatpush2.msra.mxu0 0.0
    %281 = vmatprep.subr.mxu0 0.0
    %282 = vmatpush2.msra.mxu0 0.0
    %283 = vmatprep.mubr.f32.mxu0 0.0
    %284 = vmatmul.mubr.f32.gmra.mxu0 %v197
    %v285 = vpop.f32.mrf.mxu0
    %v286 = vadd.f32 %v218, %v285
    %v287 = vpop.f32.mrf.mxu0
    %288 = vdwg.mxu0
    %vm289 = vcmp.ge.f32.partialorder %v286, 0.0
    %v290 = vmul.f32 %v163, %v286
    %v291 = vsel %vm289, %v286, %v290
    %v292 = vld [vmem:[%s3 + $0x2] sm:$0x1]
    %v293 = vld [vmem:[%s3 + $0x6] sm:$0x1]
    %v294 = vld [vmem:[%s3 + $0xa] sm:$0x1]
    %v295 = vrot.slane %v291, 4
    %v296 = vadd.f32 %v291, %v295
    %v297 = vrot.slane %v296, 2
    %v298 = vadd.f32 %v296, %v297
    %v299 = vrot.slane %v298, 1
    %v300 = vadd.f32 %v298, %v299
    %v301 = vmul.f32 %v300, %v45
    %v302 = vsub.f32 %v291, %v301
    %v303 = vmul.f32 %v302, %v302
    %v304 = vrot.slane %v303, 4
    %v305 = vadd.f32 %v303, %v304
    %v306 = vrot.slane %v305, 2
    %v307 = vadd.f32 %v305, %v306
    %v308 = vrot.slane %v307, 1
    %v309 = vadd.f32 %v307, %v308
    %v310 = vmul.f32 %v309, %v45
    %v311 = vadd.f32 %v310, 1e-05
    %v312 = vrsqrt.pop %v311
    %v313 = vmul.f32 %v302, %v312
    %v314 = vlaneseq
    %v315 = vshrl.u32 %v314, 7
    %v316 = vsub.s32 0, %v315
    %v317 = vrot.slane %v292, %v316
    %v318 = vmul.f32 %v313, %v317
    %v319 = vlaneseq
    %v320 = vshrl.u32 %v319, 7
    %v321 = vsub.s32 0, %v320
    %v322 = vrot.slane %v293, %v321
    %v323 = vadd.f32 %v318, %v322
    %s324 = scalar_lea.vmem [#allocation2], 256
    %v325 = vld [vmem:[%s324] sm:$0xff]
    %v326 = vld [vmem:[%s324 + $0x8] sm:$0xff]
    %v327 = vld [vmem:[%s324 + $0x10] sm:$0xff]
    %v328 = vld [vmem:[%s324 + $0x18] sm:$0xff]
    %v329 = vld [vmem:[%s324 + $0x20] sm:$0xff]
    %v330 = vld [vmem:[%s324 + $0x28] sm:$0xff]
    %v331 = vld [vmem:[%s324 + $0x30] sm:$0xff]
    %v332 = vld [vmem:[%s324 + $0x38] sm:$0xff]
    %v333 = vld [vmem:[%s324 + $0x40] sm:$0xff]
    %v334 = vld [vmem:[%s324 + $0x48] sm:$0xff]
    %v335 = vld [vmem:[%s324 + $0x50] sm:$0xff]
    %v336 = vld [vmem:[%s324 + $0x58] sm:$0xff]
    %v337 = vld [vmem:[%s324 + $0x60] sm:$0xff]
    %v338 = vld [vmem:[%s324 + $0x68] sm:$0xff]
    %v339 = vld [vmem:[%s324 + $0x70] sm:$0xff]
    %v340 = vld [vmem:[%s324 + $0x78] sm:$0xff]
    %v341 = vlaneseq
    %v342 = vshrl.u32 %v341, 7
    %v343 = vsub.s32 0, %v342
    %v344 = vrot.slane %v294, %v343
    %345 = vmatprep.subr.mxu0 0.0
    %346 = vmatpush1.msra.mxu0 %v340
    %347 = vmatprep.subr.mxu0 0.0
    %348 = vmatpush1.msra.mxu0 %v339
    %349 = vmatprep.subr.mxu0 0.0
    %350 = vmatpush1.msra.mxu0 %v338
    %351 = vmatprep.subr.mxu0 0.0
    %352 = vmatpush1.msra.mxu0 %v337
    %353 = vmatprep.subr.mxu0 0.0
    %354 = vmatpush1.msra.mxu0 %v336
    %355 = vmatprep.subr.mxu0 0.0
    %356 = vmatpush1.msra.mxu0 %v335
    %357 = vmatprep.subr.mxu0 0.0
    %358 = vmatpush1.msra.mxu0 %v334
    %359 = vmatprep.subr.mxu0 0.0
    %360 = vmatpush1.msra.mxu0 %v333
    %361 = vmatprep.subr.mxu0 0.0
    %362 = vmatpush1.msra.mxu0 %v332
    %363 = vmatprep.subr.mxu0 0.0
    %364 = vmatpush1.msra.mxu0 %v331
    %365 = vmatprep.subr.mxu0 0.0
    %366 = vmatpush1.msra.mxu0 %v330
    %367 = vmatprep.subr.mxu0 0.0
    %368 = vmatpush1.msra.mxu0 %v329
    %369 = vmatprep.subr.mxu0 0.0
    %370 = vmatpush1.msra.mxu0 %v328
    %371 = vmatprep.subr.mxu0 0.0
    %372 = vmatpush1.msra.mxu0 %v327
    %373 = vmatprep.subr.mxu0 0.0
    %374 = vmatpush1.msra.mxu0 %v326
    %375 = vmatprep.subr.mxu0 0.0
    %376 = vmatpush1.msra.mxu0 %v325
    %377 = vmatprep.subr.mxu0 0.0
    %378 = vmatpush2.msra.mxu0 0.0
    %379 = vmatprep.subr.mxu0 0.0
    %380 = vmatpush2.msra.mxu0 0.0
    %381 = vmatprep.subr.mxu0 0.0
    %382 = vmatpush2.msra.mxu0 0.0
    %383 = vmatprep.subr.mxu0 0.0
    %384 = vmatpush2.msra.mxu0 0.0
    %385 = vmatprep.subr.mxu0 0.0
    %386 = vmatpush2.msra.mxu0 0.0
    %387 = vmatprep.subr.mxu0 0.0
    %388 = vmatpush2.msra.mxu0 0.0
    %389 = vmatprep.subr.mxu0 0.0
    %390 = vmatpush2.msra.mxu0 0.0
    %391 = vmatprep.subr.mxu0 0.0
    %392 = vmatpush2.msra.mxu0 0.0
    %393 = vmatprep.subr.mxu0 0.0
    %394 = vmatpush2.msra.mxu0 0.0
    %395 = vmatprep.subr.mxu0 0.0
    %396 = vmatpush2.msra.mxu0 0.0
    %397 = vmatprep.subr.mxu0 0.0
    %398 = vmatpush2.msra.mxu0 0.0
    %399 = vmatprep.subr.mxu0 0.0
    %400 = vmatpush2.msra.mxu0 0.0
    %401 = vmatprep.subr.mxu0 0.0
    %402 = vmatpush2.msra.mxu0 0.0
    %403 = vmatprep.subr.mxu0 0.0
    %404 = vmatpush2.msra.mxu0 0.0
    %405 = vmatprep.subr.mxu0 0.0
    %406 = vmatpush2.msra.mxu0 0.0
    %407 = vmatprep.subr.mxu0 0.0
    %408 = vmatpush2.msra.mxu0 0.0
    %409 = vmatprep.mubr.f32.mxu0 0.0
    %410 = vmatmul.mubr.f32.gmra.mxu0 %v323
    %v411 = vpop.f32.mrf.mxu0
    %v412 = vadd.f32 %v344, %v411
    %v413 = vpop.f32.mrf.mxu0
    %414 = vdwg.mxu0
    %vm415 = vcmp.ge.f32.partialorder %v412, 0.0
    %v416 = vmul.f32 %v163, %v412
    %v417 = vsel %vm415, %v412, %v416
    %v418 = vld [vmem:[%s3 + $0x3] sm:$0x1]
    %v419 = vld [vmem:[%s3 + $0x7] sm:$0x1]
    %v420 = vld [vmem:[%s3 + $0xb] sm:$0x1]
    %v421 = vrot.slane %v417, 4
    %v422 = vadd.f32 %v417, %v421
    %v423 = vrot.slane %v422, 2
    %v424 = vadd.f32 %v422, %v423
    %v425 = vrot.slane %v424, 1
    %v426 = vadd.f32 %v424, %v425
    %v427 = vmul.f32 %v426, %v45
    %v428 = vsub.f32 %v417, %v427
    %v429 = vmul.f32 %v428, %v428
    %v430 = vrot.slane %v429, 4
    %v431 = vadd.f32 %v429, %v430
    %v432 = vrot.slane %v431, 2
    %v433 = vadd.f32 %v431, %v432
    %v434 = vrot.slane %v433, 1
    %v435 = vadd.f32 %v433, %v434
    %v436 = vmul.f32 %v435, %v45
    %v437 = vadd.f32 %v436, 1e-05
    %v438 = vrsqrt.pop %v437
    %v439 = vmul.f32 %v428, %v438
    %v440 = vlaneseq
    %v441 = vshrl.u32 %v440, 7
    %v442 = vsub.s32 0, %v441
    %v443 = vrot.slane %v418, %v442
    %v444 = vmul.f32 %v439, %v443
    %v445 = vlaneseq
    %v446 = vshrl.u32 %v445, 7
    %v447 = vsub.s32 0, %v446
    %v448 = vrot.slane %v419, %v447
    %v449 = vadd.f32 %v444, %v448
    %s450 = scalar_lea.vmem [#allocation2], 384
    %v451 = vld [vmem:[%s450] sm:$0xff]
    %v452 = vld [vmem:[%s450 + $0x8] sm:$0xff]
    %v453 = vld [vmem:[%s450 + $0x10] sm:$0xff]
    %v454 = vld [vmem:[%s450 + $0x18] sm:$0xff]
    %v455 = vld [vmem:[%s450 + $0x20] sm:$0xff]
    %v456 = vld [vmem:[%s450 + $0x28] sm:$0xff]
    %v457 = vld [vmem:[%s450 + $0x30] sm:$0xff]
    %v458 = vld [vmem:[%s450 + $0x38] sm:$0xff]
    %v459 = vld [vmem:[%s450 + $0x40] sm:$0xff]
    %v460 = vld [vmem:[%s450 + $0x48] sm:$0xff]
    %v461 = vld [vmem:[%s450 + $0x50] sm:$0xff]
    %v462 = vld [vmem:[%s450 + $0x58] sm:$0xff]
    %v463 = vld [vmem:[%s450 + $0x60] sm:$0xff]
    %v464 = vld [vmem:[%s450 + $0x68] sm:$0xff]
    %v465 = vld [vmem:[%s450 + $0x70] sm:$0xff]
    %v466 = vld [vmem:[%s450 + $0x78] sm:$0xff]
    %v467 = vlaneseq
    %v468 = vshrl.u32 %v467, 7
    %v469 = vsub.s32 0, %v468
    %v470 = vrot.slane %v420, %v469
    %471 = vmatprep.subr.mxu0 0.0
    %472 = vmatpush1.msra.mxu0 %v466
    %473 = vmatprep.subr.mxu0 0.0
    %474 = vmatpush1.msra.mxu0 %v465
    %475 = vmatprep.subr.mxu0 0.0
    %476 = vmatpush1.msra.mxu0 %v464
    %477 = vmatprep.subr.mxu0 0.0
    %478 = vmatpush1.msra.mxu0 %v463
    %479 = vmatprep.subr.mxu0 0.0
    %480 = vmatpush1.msra.mxu0 %v462
    %481 = vmatprep.subr.mxu0 0.0
    %482 = vmatpush1.msra.mxu0 %v461
    %483 = vmatprep.subr.mxu0 0.0
    %484 = vmatpush1.msra.mxu0 %v460
    %485 = vmatprep.subr.mxu0 0.0
    %486 = vmatpush1.msra.mxu0 %v459
    %487 = vmatprep.subr.mxu0 0.0
    %488 = vmatpush1.msra.mxu0 %v458
    %489 = vmatprep.subr.mxu0 0.0
    %490 = vmatpush1.msra.mxu0 %v457
    %491 = vmatprep.subr.mxu0 0.0
    %492 = vmatpush1.msra.mxu0 %v456
    %493 = vmatprep.subr.mxu0 0.0
    %494 = vmatpush1.msra.mxu0 %v455
    %495 = vmatprep.subr.mxu0 0.0
    %496 = vmatpush1.msra.mxu0 %v454
    %497 = vmatprep.subr.mxu0 0.0
    %498 = vmatpush1.msra.mxu0 %v453
    %499 = vmatprep.subr.mxu0 0.0
    %500 = vmatpush1.msra.mxu0 %v452
    %501 = vmatprep.subr.mxu0 0.0
    %502 = vmatpush1.msra.mxu0 %v451
    %503 = vmatprep.subr.mxu0 0.0
    %504 = vmatpush2.msra.mxu0 0.0
    %505 = vmatprep.subr.mxu0 0.0
    %506 = vmatpush2.msra.mxu0 0.0
    %507 = vmatprep.subr.mxu0 0.0
    %508 = vmatpush2.msra.mxu0 0.0
    %509 = vmatprep.subr.mxu0 0.0
    %510 = vmatpush2.msra.mxu0 0.0
    %511 = vmatprep.subr.mxu0 0.0
    %512 = vmatpush2.msra.mxu0 0.0
    %513 = vmatprep.subr.mxu0 0.0
    %514 = vmatpush2.msra.mxu0 0.0
    %515 = vmatprep.subr.mxu0 0.0
    %516 = vmatpush2.msra.mxu0 0.0
    %517 = vmatprep.subr.mxu0 0.0
    %518 = vmatpush2.msra.mxu0 0.0
    %519 = vmatprep.subr.mxu0 0.0
    %520 = vmatpush2.msra.mxu0 0.0
    %521 = vmatprep.subr.mxu0 0.0
    %522 = vmatpush2.msra.mxu0 0.0
    %523 = vmatprep.subr.mxu0 0.0
    %524 = vmatpush2.msra.mxu0 0.0
    %525 = vmatprep.subr.mxu0 0.0
    %526 = vmatpush2.msra.mxu0 0.0
    %527 = vmatprep.subr.mxu0 0.0
    %528 = vmatpush2.msra.mxu0 0.0
    %529 = vmatprep.subr.mxu0 0.0
    %530 = vmatpush2.msra.mxu0 0.0
    %531 = vmatprep.subr.mxu0 0.0
    %532 = vmatpush2.msra.mxu0 0.0
    %533 = vmatprep.subr.mxu0 0.0
    %534 = vmatpush2.msra.mxu0 0.0
    %535 = vmatprep.mubr.f32.mxu0 0.0
    %536 = vmatmul.mubr.f32.gmra.mxu0 %v449
    %v537 = vpop.f32.mrf.mxu0
    %v538 = vadd.f32 %v470, %v537
    %v539 = vpop.f32.mrf.mxu0
    %540 = vdwg.mxu0
    %vm541 = vcmp.lt.s32.totalorder %v35, 64
    %v542 = vtanh.pop %v538
    %vm543 = vcmp.ge.f32.partialorder %v538, 0.0
    %v544 = vmul.f32 %v163, %v538
    %v545 = vsel %vm543, %v538, %v544
    %v546 = vsel %vm541, 1, 0
    %vm547 = vcmp.eq.s32.totalorder %v546, 1
    %v548 = vsel %vm547, %v542, %v545
    %vm549 = vcmp.lt.s32.totalorder %v35, 8
    %v550 = vld [vmem:[%s3 + $0xd] sm:$0x1]
    %v551 = vmax.f32 %v550, 0.05
    %v552 = vmin.f32 %v551, 0.5
    %v553 = vlog2.pop %v552
    %v554 = vmul.f32 %v553, 0.6931472
    %v555 = vsel %vm549, 1, 0
    %vm556 = vcmp.eq.s32.totalorder %v555, 1
    %v557 = vsel %vm556, %v548, 0.0
    %v558 = vlaneseq
    %v559 = vshrl.u32 %v558, 7
    %v560 = vsub.s32 0, %v559
    %v561 = vrot.slane %v552, %v560
    %v562 = vmul.f32 %v561, %v32
    %v563 = vadd.f32 %v548, %v562
    %v564 = vsel %vm556, %v563, 0.0
    %v565 = vsub.f32 %v564, %v557
    %v566 = vmul.f32 %v565, %v565
    %v567 = vsub.f32 0.0, %v566
    %v568 = vmul.f32 %v552, 2.0
    %v569 = vmul.f32 %v568, %v552
    %v570 = vlaneseq
    %v571 = vshrl.u32 %v570, 7
    %v572 = vsub.s32 0, %v571
    %v573 = vrot.slane %v569, %v572
    %v574 = vrcp.pop %v573
    %v575 = vmul.f32 %v567, %v574
    %v576 = vlaneseq
    %v577 = vshrl.u32 %v576, 7
    %v578 = vsub.s32 0, %v577
    %v579 = vrot.slane %v554, %v578
    %v580 = vsub.f32 %v575, %v579
    %v581 = vsub.f32 %v580, 0.9189385
    %v582 = vsel %vm556, %v581, 0.0
    %583 = vadd.xlane.f32.xlu0 %v582
    %v584 = vpop.xlane.xlu0 %583
    %v585 = vadd.f32 %v554, 1.4189385
    %v586 = vsel %vm549, %v585, 0.0
    %vm587 = vcmask 1040384
    %v588 = vsel %vm587, %v586, 0.0
    %589 = vadd.xlane.f32.xlu0 %v588
    %v590 = vpop.xlane.xlu0 %589
    %v591 = vmul.f32 %v590, %v45
    %vm592 = vcmp.eq.s32.totalorder %v35, 8
    %v593 = vsel %vm592, 1, 0
    %vm594 = vcmp.eq.s32.totalorder %v593, 1
    %v595 = vsel %vm594, %v584, %v564
    %vm596 = vcmp.eq.s32.totalorder %v35, 9
    %v597 = vsel %vm596, 1, 0
    %vm598 = vcmp.eq.s32.totalorder %v597, 1
    %v599 = vlaneseq
    %v600 = vshrl.u32 %v599, 7
    %v601 = vsub.s32 0, %v600
    %v602 = vrot.slane %v591, %v601
    %v603 = vsel %vm598, %v602, %v595
    %vm604 = vcmp.eq.s32.totalorder %v35, 10
    %v605 = vsel %vm604, 1, 0
    %vm606 = vcmp.eq.s32.totalorder %v605, 1
    %608 = vset.pattern.permute.xlu0 64
    %609 = vperm.xlu0 %608, %v548
    %v610 = vpop.permute.xlu0 %609
    %v612 = vsel %vm606, %v610, %v603
    %613 = vst [vmem:[%s4] sm:$0xff] %v612
    // Predicated region
    $region22: #{ppo_actor_critic_forward.1} parent=1 // pred_check
      _
    $region23: #{ppo_actor_critic_forward.1} parent=1 // pred_check_branch
      %615 = sbr.rel (0) target = $region25
    $region24: #{ppo_actor_critic_forward.1} parent=1 // pred_region
      _
    $region25: #{ppo_actor_critic_forward.1} parent=1 // pred_fallthru
      _
    // Predicated region
    $region26: #{ppo_actor_critic_forward.1} parent=1 // pred_check
      _
    $region27: #{ppo_actor_critic_forward.1} parent=1 // pred_check_branch
      %617 = sbr.rel (0) target = $region29
    $region28: #{ppo_actor_critic_forward.1} parent=1 // pred_region
      _
    $region29: #{ppo_actor_critic_forward.1} parent=1 // pred_fallthru
      _
    %618 = vsyncpa [#allocation3], 1

</llo_original>
